<compile_context>
chip_gen: v7x
topology: tpu7x:2x2x1
jax: 0.10.0
libtpu: 0.0.40
codegen_flags: <defaults>
</compile_context>

<pallas_src>
import functools

import jax
import jax.numpy as jnp
from jax.experimental import pallas as pl
from jax.experimental.pallas import tpu as pltpu


_LANE = 128
_SUBLANE = 8
_VMEM_BUDGET_BYTES = 48 * 1024 * 1024   # conservative: leaves headroom on v7x (64 MiB)
_VMEM_LIMIT_BYTES = 64 * 1024 * 1024    # raise above the 16/32 MiB scoped defaults


def _round_up(x, m):
    return (x + m - 1) // m * m


def _autoencoder_kernel(x_ref, w_enc_ref, b_enc_ref, w_dec_ref, b_dec_ref, o_ref):
    # Encoder: [tb, D] @ [D, Ep] on the MXU, f32 accumulate; f32 epilogue (bias + ReLU).
    h = jnp.dot(x_ref[...], w_enc_ref[...], preferred_element_type=jnp.float32)
    h = jnp.maximum(h + b_enc_ref[...], 0.0)
    # Decoder: feed the MXU in the weight dtype (bf16 fast path), f32 accumulate.
    y = jnp.dot(h.astype(w_dec_ref.dtype), w_dec_ref[...],
                preferred_element_type=jnp.float32)
    y = y + b_dec_ref[...]
    # Epilogue stays f32 (v5e has no bf16 VPU/EUP).
    o_ref[...] = jax.nn.sigmoid(y).astype(o_ref.dtype)


def _select_tb(B, D, in_bytes, out_bytes, weight_bytes, tb):
    """Pick a batch tile: big enough to fill the MXU / amortize grid-step overhead,
    small enough to fit a v7x-sized VMEM budget, and (when B allows) leaving >= 2
    grid steps so the 'parallel' axis can shard across v7x's two TensorCores."""
    if tb is None:
        if B >= 1024:
            tb = 512          # multiple of 256 -> full MXU passes on v6e/v7x
        elif B >= 512:
            tb = 256
        elif B >= 256:
            tb = 128          # keeps grid >= 2 for the 2-TC split
        else:
            tb = _round_up(max(B, _SUBLANE), _SUBLANE)   # tiny problem: 1 grid step
    tb = _round_up(tb, _SUBLANE)
    # Double-buffered x/out tiles + single-buffered resident weights must fit VMEM.
    while tb > _SUBLANE and (2 * tb * D * (in_bytes + out_bytes) + weight_bytes) > _VMEM_BUDGET_BYTES:
        tb = _round_up(tb // 2, _SUBLANE)
    return tb


@functools.partial(jax.jit, static_argnames=("tb", "use_bf16"))
def autoencoder_forward(x, w_enc, b_enc, w_dec, b_dec, *, tb=None, use_bf16=True):
    """x: [B, D]. Returns sigmoid(dec(relu(enc(x)))) : [B, D] in x.dtype."""
    B, D = x.shape
    E = w_enc.shape[1]
    assert w_enc.shape == (D, E) and w_dec.shape == (E, D)

    out_dtype = x.dtype
    in_dtype = jnp.bfloat16 if use_bf16 else x.dtype
    w_dtype = jnp.bfloat16 if use_bf16 else w_enc.dtype

    # Lane-pad the encoding dim (E=32 -> 128) so the hidden activation is lane-dense.
    # Zero padding is numerically exact: relu(0 + 0) = 0 and zero decoder rows add 0.
    Ep = _round_up(E, _LANE)
    w_enc_p = jnp.zeros((D, Ep), w_dtype).at[:, :E].set(w_enc.astype(w_dtype))
    b_enc_p = jnp.zeros((1, Ep), jnp.float32).at[:, :E].set(b_enc.astype(jnp.float32))
    w_dec_p = jnp.zeros((Ep, D), w_dtype).at[:E, :].set(w_dec.astype(w_dtype))
    b_dec_p = b_dec.reshape(1, D).astype(jnp.float32)

    in_bytes = jnp.dtype(in_dtype).itemsize
    out_bytes = jnp.dtype(out_dtype).itemsize
    weight_bytes = 2 * D * Ep * jnp.dtype(w_dtype).itemsize + (Ep + D) * 4

    tb_sel = _select_tb(B, D, in_bytes, out_bytes, weight_bytes, tb)

    # Pad the batch so it divides evenly into tb_sel-row tiles; slice afterwards.
    Bp = _round_up(B, tb_sel)
    x_p = x.astype(in_dtype)
    if Bp != B:
        x_p = jnp.zeros((Bp, D), in_dtype).at[:B, :].set(x_p)

    grid = (Bp // tb_sel,)

    cost = pl.CostEstimate(
        flops=4 * Bp * D * Ep,                                   # two matmuls
        transcendentals=Bp * D,                                  # sigmoid exp
        bytes_accessed=Bp * D * (in_bytes + out_bytes) + weight_bytes,
    )

    # Weights/biases never change across grid steps -> single-buffer them.
    resident = dict(pipeline_mode=pl.Buffered(1))

    out = pl.pallas_call(
        _autoencoder_kernel,
        out_shape=jax.ShapeDtypeStruct((Bp, D), out_dtype),
        grid_spec=pltpu.PrefetchScalarGridSpec(
            num_scalar_prefetch=0,
            grid=grid,
            in_specs=[
                pl.BlockSpec((tb_sel, D), lambda i: (i, 0)),              # x tile
                pl.BlockSpec((D, Ep), lambda i: (0, 0), **resident),      # enc weight
                pl.BlockSpec((1, Ep), lambda i: (0, 0), **resident),      # enc bias
                pl.BlockSpec((Ep, D), lambda i: (0, 0), **resident),      # dec weight
                pl.BlockSpec((1, D), lambda i: (0, 0), **resident),       # dec bias
            ],
            out_specs=pl.BlockSpec((tb_sel, D), lambda i: (i, 0)),
        ),
        compiler_params=pltpu.CompilerParams(
            dimension_semantics=("parallel",),
            vmem_limit_bytes=_VMEM_LIMIT_BYTES,
        ),
        cost_estimate=cost,
    )(x_p, w_enc_p, b_enc_p, w_dec_p, b_dec_p)

    return out[:B] if Bp != B else out


def init_params(key, input_dim, encoding_dim):
    """Deterministic init mirroring torch.nn.Linear (uniform +-1/sqrt(fan_in))."""
    k1, k2, k3, k4 = jax.random.split(key, 4)
    bound_enc = 1.0 / jnp.sqrt(jnp.float32(input_dim))
    bound_dec = 1.0 / jnp.sqrt(jnp.float32(encoding_dim))
    # Stored transposed relative to PyTorch so the kernel does x @ W directly.
    w_enc = jax.random.uniform(k1, (input_dim, encoding_dim), jnp.float32,
                               -bound_enc, bound_enc)
    b_enc = jax.random.uniform(k2, (encoding_dim,), jnp.float32,
                               -bound_enc, bound_enc)
    w_dec = jax.random.uniform(k3, (encoding_dim, input_dim), jnp.float32,
                               -bound_dec, bound_dec)
    b_dec = jax.random.uniform(k4, (input_dim,), jnp.float32,
                               -bound_dec, bound_dec)
    return w_enc, b_enc, w_dec, b_dec


def reference_forward(x, w_enc, b_enc, w_dec, b_dec):
    h = jnp.maximum(x @ w_enc + b_enc, 0.0)
    return jax.nn.sigmoid(h @ w_dec + b_dec)


if __name__ == "__main__":
    key = jax.random.PRNGKey(0)
    # Small demo shape (input ~256 KB). B=256 -> tb=128, grid=(2,): exercises the
    # multi-step pipeline and the v7x 2-TC parallel split while staying tiny.
    B, D, E = 256, 256, 32

    kx, kp = jax.random.split(key)
    x = jax.random.normal(kx, (B, D), jnp.float32)
    w_enc, b_enc, w_dec, b_dec = init_params(kp, D, E)

    ref = reference_forward(x, w_enc, b_enc, w_dec, b_dec)

    # Exact f32 path.
    out_f32 = jax.block_until_ready(
        autoencoder_forward(x, w_enc, b_enc, w_dec, b_dec, use_bf16=False))
    assert out_f32.shape == (B, D) and out_f32.dtype == jnp.float32
    assert jnp.allclose(out_f32, ref, atol=1e-5, rtol=1e-5), "f32 path mismatch"

    # Default fast bf16-MXU path (f32 accumulate + f32 epilogue).
    out_bf16 = jax.block_until_ready(
        autoencoder_forward(x, w_enc, b_enc, w_dec, b_dec))
    assert out_bf16.shape == (B, D) and out_bf16.dtype == jnp.float32
    assert jnp.allclose(out_bf16, ref, atol=3e-2, rtol=3e-2), "bf16 path mismatch"

    print("KERNEL_OK")
</pallas_src>

<mosaic_0001>
module attributes {stable_mosaic.version = 11 : i64} {
  func.func @_autoencoder_kernel(%arg0: i32, %arg1: memref<128x256xf32, #tpu.memory_space<vmem>>, %arg2: memref<256x128xf32, #tpu.memory_space<vmem>>, %arg3: memref<1x128xf32, #tpu.memory_space<vmem>>, %arg4: memref<128x256xf32, #tpu.memory_space<vmem>>, %arg5: memref<1x256xf32, #tpu.memory_space<vmem>>, %arg6: memref<128x256xf32, #tpu.memory_space<vmem>>) attributes {dimension_semantics = [#tpu.dimension_semantics<parallel>], iteration_bounds = array<i64: 2>, scalar_prefetch = 0 : i64, scratch_operands = 0 : i64, tpu.core_type = #tpu.core_type<tc>, window_params = [{transform_indices = @transform_0, window_bounds = array<i64: 128, 256>}, {pipeline_mode = #tpu.pipeline_mode<synchronous>, transform_indices = @transform_1, window_bounds = array<i64: 256, 128>}, {pipeline_mode = #tpu.pipeline_mode<synchronous>, transform_indices = @transform_2, window_bounds = array<i64: 1, 128>}, {pipeline_mode = #tpu.pipeline_mode<synchronous>, transform_indices = @transform_3, window_bounds = array<i64: 128, 256>}, {pipeline_mode = #tpu.pipeline_mode<synchronous>, transform_indices = @transform_4, window_bounds = array<i64: 1, 256>}, {transform_indices = @transform_5, window_bounds = array<i64: 128, 256>}]} {
    %c0 = arith.constant 0 : index
    %c0_0 = arith.constant 0 : index
    %0 = vector.load %arg1[%c0, %c0_0] : memref<128x256xf32, #tpu.memory_space<vmem>>, vector<128x256xf32>
    %c0_1 = arith.constant 0 : index
    %c0_2 = arith.constant 0 : index
    %1 = vector.load %arg2[%c0_1, %c0_2] : memref<256x128xf32, #tpu.memory_space<vmem>>, vector<256x128xf32>
    %cst = arith.constant dense<0.000000e+00> : vector<128x128xf32>
    %2 = tpu.matmul %0, %1, %cst {dimension_numbers = #tpu.dot_dimension_numbers<[1], [0], [0], [1], [0, 0, 1, 1], [], []>} : vector<128x256xf32>, vector<256x128xf32>, vector<128x128xf32> -> vector<128x128xf32>
    %c0_3 = arith.constant 0 : index
    %c0_4 = arith.constant 0 : index
    %3 = vector.load %arg3[%c0_3, %c0_4] : memref<1x128xf32, #tpu.memory_space<vmem>>, vector<1x128xf32>
    %4 = vector.broadcast %3 : vector<1x128xf32> to vector<128x128xf32>
    %5 = arith.addf %2, %4 : vector<128x128xf32>
    %cst_5 = arith.constant 0.000000e+00 : f32
    %6 = vector.broadcast %cst_5 : f32 to vector<128x128xf32>
    %7 = arith.maximumf %5, %6 : vector<128x128xf32>
    %c0_6 = arith.constant 0 : index
    %c0_7 = arith.constant 0 : index
    %8 = vector.load %arg4[%c0_6, %c0_7] : memref<128x256xf32, #tpu.memory_space<vmem>>, vector<128x256xf32>
    %cst_8 = arith.constant dense<0.000000e+00> : vector<128x256xf32>
    %9 = tpu.matmul %7, %8, %cst_8 {dimension_numbers = #tpu.dot_dimension_numbers<[1], [0], [0], [1], [0, 0, 1, 1], [], []>} : vector<128x128xf32>, vector<128x256xf32>, vector<128x256xf32> -> vector<128x256xf32>
    %c0_9 = arith.constant 0 : index
    %c0_10 = arith.constant 0 : index
    %10 = vector.load %arg5[%c0_9, %c0_10] : memref<1x256xf32, #tpu.memory_space<vmem>>, vector<1x256xf32>
    %11 = vector.broadcast %10 : vector<1x256xf32> to vector<128x256xf32>
    %12 = arith.addf %9, %11 : vector<128x256xf32>
    %13 = arith.negf %12 : vector<128x256xf32>
    %14 = math.exp %13 : vector<128x256xf32>
    %cst_11 = arith.constant 1.000000e+00 : f32
    %15 = vector.broadcast %cst_11 : f32 to vector<128x256xf32>
    %16 = arith.addf %15, %14 : vector<128x256xf32>
    %17 = arith.divf %15, %16 : vector<128x256xf32>
    %c0_12 = arith.constant 0 : index
    %c0_13 = arith.constant 0 : index
    %18 = vector.load %arg6[%c0_12, %c0_13] : memref<128x256xf32, #tpu.memory_space<vmem>>, vector<128x256xf32>
    tpu.vector_store %arg6[%c0_12, %c0_13], %17 {strides = array<i32>} : memref<128x256xf32, #tpu.memory_space<vmem>>, vector<128x256xf32>,
    return
  }
  func.func @transform_0(%arg0: i32) -> (i32, i32) {
    %c0_i32 = arith.constant 0 : i32
    %c0_i32_0 = arith.constant 0 : i32
    return %arg0, %c0_i32 : i32, i32
  }
  func.func @transform_1(%arg0: i32) -> (i32, i32) {
    %c0_i32 = arith.constant 0 : i32
    %c0_i32_0 = arith.constant 0 : i32
    %c0_i32_1 = arith.constant 0 : i32
    return %c0_i32, %c0_i32_0 : i32, i32
  }
  func.func @transform_2(%arg0: i32) -> (i32, i32) {
    %c0_i32 = arith.constant 0 : i32
    %c0_i32_0 = arith.constant 0 : i32
    %c0_i32_1 = arith.constant 0 : i32
    return %c0_i32, %c0_i32_0 : i32, i32
  }
  func.func @transform_3(%arg0: i32) -> (i32, i32) {
    %c0_i32 = arith.constant 0 : i32
    %c0_i32_0 = arith.constant 0 : i32
    %c0_i32_1 = arith.constant 0 : i32
    return %c0_i32, %c0_i32_0 : i32, i32
  }
  func.func @transform_4(%arg0: i32) -> (i32, i32) {
    %c0_i32 = arith.constant 0 : i32
    %c0_i32_0 = arith.constant 0 : i32
    %c0_i32_1 = arith.constant 0 : i32
    return %c0_i32, %c0_i32_0 : i32, i32
  }
  func.func @transform_5(%arg0: i32) -> (i32, i32) {
    %c0_i32 = arith.constant 0 : i32
    %c0_i32_0 = arith.constant 0 : i32
    return %arg0, %c0_i32 : i32, i32
  }
}

</mosaic_0001>

<llo_original>
// kernel: autoencoder_forward.1
$region0: #{autoencoder_forward.1}
  #allocation0 [shape = 'u32[]', space=smem, size = 0x4, offset = 0x4, fixed_abs, tag = 'smem constant byte address 0x4 - core index']
  #allocation1 [shape = 'u32[144,128]{1,0:T(1,128)}', space=vmem, size = 0x12000, scoped, tag = 'internal scratch']
  %s0 = inlined_call_operand.hbm [shape: f32[256,256], index: 0, kind: input, shape index: {}]
  %s1 = inlined_call_operand.hbm [shape: f32[256,128], index: 1, kind: input, shape index: {}]
  %s2 = inlined_call_operand.hbm [shape: f32[1,128], index: 2, kind: input, shape index: {}]
  %s3 = inlined_call_operand.hbm [shape: f32[128,256], index: 3, kind: input, shape index: {}]
  %s4 = inlined_call_operand.hbm [shape: f32[1,256], index: 4, kind: input, shape index: {}]
  %s5 = inlined_call_operand.hbm [shape: f32[256,256], index: 5, kind: output, shape index: {}]
  %s6 = sld [smem:[#allocation0]]
  $region73: #{autoencoder_forward.1} parent=0
    _
  %s8 = ssub.s32 1, %s6
  %s9 = scalar_select 0, %s8, %s6
  $region1: #{autoencoder_forward.1} parent=0
    #allocation2 [shape = 'u8[262144]{0}', space=vmem, size = 0x40000, scoped, tag = 'input window, operand 0']
    #allocation3 [shape = 's32[2]{0}', space=sflag, size = 0x8, scoped, tag = 'scoped memory for autoencoder_forward.1']
    #allocation4 [shape = 's32[2]{0}', space=sflag, size = 0x8, scoped, tag = 'scoped memory for autoencoder_forward.1']
    #allocation5 [shape = 'u8[131072]{0}', space=vmem, size = 0x20000, scoped, tag = 'input window, operand 1, single buffered']
    #allocation6 [shape = 's32[1]{0}', space=sflag, size = 0x4, scoped, tag = 'scoped memory for autoencoder_forward.1']
    #allocation7 [shape = 'u8[512]{0}', space=vmem, size = 0x400, scoped, tag = 'input window, operand 2, single buffered']
    #allocation8 [shape = 'u8[131072]{0}', space=vmem, size = 0x20000, scoped, tag = 'input window, operand 3, single buffered']
    #allocation9 [shape = 's32[1]{0}', space=sflag, size = 0x4, scoped, tag = 'scoped memory for autoencoder_forward.1']
    #allocation10 [shape = 'u8[1024]{0}', space=vmem, size = 0x400, scoped, tag = 'input window, operand 4, single buffered']
    #allocation11 [shape = 'u8[262144]{0}', space=vmem, size = 0x40000, scoped, tag = 'output window, operand 0']
    %10 = vsyncpa [#allocation3], 0
    %s11 = scalar_lea.sflag [#allocation3], 1
    %12 = vsyncpa %s11, 0
    %13 = vsyncpa [#allocation6], 0
    %14 = vsyncpa [#allocation9], 0
    %15 = vsyncpa [#allocation4], 0
    %s16 = scalar_lea.sflag [#allocation4], 1
    %17 = vsyncpa %s16, 0
    loop: start=0, step=1, limit=4
    $region2: #{autoencoder_forward.1} parent=1 // loop_pre_header
      _
    $region3: #{autoencoder_forward.1} parent=1 // loop_header
      %s19 = sphi 0, %s23
      %p20 = scmp.ge.s32.totalorder %s19, 4
      %s29 = sphi 0, %s31
      %s32 = sphi 0, %s29
      %s33 = sphi 0, %s32
      %s49 = sphi 0, %s33
      %s53 = sphi 0, %s53
      %s55 = sphi 0, %s53
      %s56 = sphi 0, %s55
      %s70 = sphi 0, %s56
      %s74 = sphi 0, %s74
      %s76 = sphi 0, %s74
      %s77 = sphi 0, %s76
      %s91 = sphi 0, %s77
      %s95 = sphi 0, %s95
      %s97 = sphi 0, %s95
      %s98 = sphi 0, %s97
      %s112 = sphi 0, %s98
      %s116 = sphi 0, %s116
      %s118 = sphi 0, %s116
      %s119 = sphi 0, %s118
      %s133 = sphi 0, %s119
      %s139 = sphi 0, %s141
      %s142 = sphi 0, %s139
      %s143 = sphi 0, %s142
      %s159 = sphi 0, %s143
    $region4: #{autoencoder_forward.1} parent=1 // loop_header_branch
      %22 = sbr.rel (%p20) target = $region8
    $region5: #{autoencoder_forward.1} parent=1 // loop_body
      %s24 = ssub.s32 %s19, 1
      %s25 = ssub.s32 %s19, 2
      %s26 = sadd.s32 %s19, 1
      %s27 = ssub.s32 %s19, %s26
      %p28 = scmp.eq.s32.totalorder %s27, 0
      %s30 = sadd.s32 %s29, 1
      %s31 = scalar_select %p28, %s29, %s30
      %p34 = pneg %p28
      %p35 = scmp.eq.s32.totalorder %s19, 1
      %p36 = por %p34, %p35
      %p37 = scmp.ne.s32.totalorder %s29, %s32
      %p38 = scmp.eq.s32.totalorder %s19, 0
      %p39 = por %p37, %p38
      %p40 = scmp.ne.s32.totalorder %s29, %s32
      %p41 = scmp.eq.s32.totalorder %s24, 1
      %p42 = por %p40, %p41
      %p43 = scmp.ne.s32.totalorder %s32, %s33
      %p44 = scmp.eq.s32.totalorder %s24, 0
      %p45 = por %p43, %p44
      %p46 = scmp.ne.s32.totalorder %s32, %s33
      %p47 = scmp.eq.s32.totalorder %s25, 1
      %p48 = por %p46, %p47
      %p50 = scmp.ne.s32.totalorder %s33, %s49
      %p51 = scmp.eq.s32.totalorder %s25, 0
      %p52 = por %p50, %p51
      %s54 = sadd.s32 %s53, 1
      %p57 = scmp.eq.s32.totalorder %s19, 1
      %p58 = scmp.ne.s32.totalorder %s53, %s55
      %p59 = scmp.eq.s32.totalorder %s19, 0
      %p60 = por %p58, %p59
      %p61 = scmp.ne.s32.totalorder %s53, %s55
      %p62 = scmp.eq.s32.totalorder %s24, 1
      %p63 = por %p61, %p62
      %p64 = scmp.ne.s32.totalorder %s55, %s56
      %p65 = scmp.eq.s32.totalorder %s24, 0
      %p66 = por %p64, %p65
      %p67 = scmp.ne.s32.totalorder %s55, %s56
      %p68 = scmp.eq.s32.totalorder %s25, 1
      %p69 = por %p67, %p68
      %p71 = scmp.ne.s32.totalorder %s56, %s70
      %p72 = scmp.eq.s32.totalorder %s25, 0
      %p73 = por %p71, %p72
      %s75 = sadd.s32 %s74, 1
      %p78 = scmp.eq.s32.totalorder %s19, 1
      %p79 = scmp.ne.s32.totalorder %s74, %s76
      %p80 = scmp.eq.s32.totalorder %s19, 0
      %p81 = por %p79, %p80
      %p82 = scmp.ne.s32.totalorder %s74, %s76
      %p83 = scmp.eq.s32.totalorder %s24, 1
      %p84 = por %p82, %p83
      %p85 = scmp.ne.s32.totalorder %s76, %s77
      %p86 = scmp.eq.s32.totalorder %s24, 0
      %p87 = por %p85, %p86
      %p88 = scmp.ne.s32.totalorder %s76, %s77
      %p89 = scmp.eq.s32.totalorder %s25, 1
      %p90 = por %p88, %p89
      %p92 = scmp.ne.s32.totalorder %s77, %s91
      %p93 = scmp.eq.s32.totalorder %s25, 0
      %p94 = por %p92, %p93
      %s96 = sadd.s32 %s95, 1
      %p99 = scmp.eq.s32.totalorder %s19, 1
      %p100 = scmp.ne.s32.totalorder %s95, %s97
      %p101 = scmp.eq.s32.totalorder %s19, 0
      %p102 = por %p100, %p101
      %p103 = scmp.ne.s32.totalorder %s95, %s97
      %p104 = scmp.eq.s32.totalorder %s24, 1
      %p105 = por %p103, %p104
      %p106 = scmp.ne.s32.totalorder %s97, %s98
      %p107 = scmp.eq.s32.totalorder %s24, 0
      %p108 = por %p106, %p107
      %p109 = scmp.ne.s32.totalorder %s97, %s98
      %p110 = scmp.eq.s32.totalorder %s25, 1
      %p111 = por %p109, %p110
      %p113 = scmp.ne.s32.totalorder %s98, %s112
      %p114 = scmp.eq.s32.totalorder %s25, 0
      %p115 = por %p113, %p114
      %s117 = sadd.s32 %s116, 1
      %p120 = scmp.eq.s32.totalorder %s19, 1
      %p121 = scmp.ne.s32.totalorder %s116, %s118
      %p122 = scmp.eq.s32.totalorder %s19, 0
      %p123 = por %p121, %p122
      %p124 = scmp.ne.s32.totalorder %s116, %s118
      %p125 = scmp.eq.s32.totalorder %s24, 1
      %p126 = por %p124, %p125
      %p127 = scmp.ne.s32.totalorder %s118, %s119
      %p128 = scmp.eq.s32.totalorder %s24, 0
      %p129 = por %p127, %p128
      %p130 = scmp.ne.s32.totalorder %s118, %s119
      %p131 = scmp.eq.s32.totalorder %s25, 1
      %p132 = por %p130, %p131
      %p134 = scmp.ne.s32.totalorder %s119, %s133
      %p135 = scmp.eq.s32.totalorder %s25, 0
      %p136 = por %p134, %p135
      %s137 = ssub.s32 %s19, %s26
      %p138 = scmp.eq.s32.totalorder %s137, 0
      %s140 = sadd.s32 %s139, 1
      %s141 = scalar_select %p138, %s139, %s140
      %p144 = pneg %p138
      %p145 = scmp.eq.s32.totalorder %s19, 1
      %p146 = por %p144, %p145
      %p147 = scmp.ne.s32.totalorder %s139, %s142
      %p148 = scmp.eq.s32.totalorder %s19, 0
      %p149 = por %p147, %p148
      %p150 = scmp.ne.s32.totalorder %s139, %s142
      %p151 = scmp.eq.s32.totalorder %s24, 1
      %p152 = por %p150, %p151
      %p153 = scmp.ne.s32.totalorder %s142, %s143
      %p154 = scmp.eq.s32.totalorder %s24, 0
      %p155 = por %p153, %p154
      %p156 = scmp.ne.s32.totalorder %s142, %s143
      %p157 = scmp.eq.s32.totalorder %s25, 1
      %p158 = por %p156, %p157
      %p160 = scmp.ne.s32.totalorder %s143, %s159
      %p161 = scmp.eq.s32.totalorder %s25, 0
      %p162 = por %p160, %p161
      %p163 = scmp.le.s32.totalorder 1, %s19
      %p164 = scmp.lt.s32.totalorder %s19, 3
      %p165 = pnand %p163, %p164
      %p166 = pneg %p165
      // Predicated region
      $region9: #{autoencoder_forward.1} parent=5 // pred_check
        _
      $region10: #{autoencoder_forward.1} parent=5 // pred_check_branch
        %168 = sbr.rel (%p165) target = $region12
      $region11: #{autoencoder_forward.1} parent=5 // pred_region
        %s169 = ssub.s32 %s19, 1
        // Predicated region
        $region13: #{autoencoder_forward.1} parent=11 // pred_check
          %p170 = pneg %p66
        $region14: #{autoencoder_forward.1} parent=11 // pred_check_branch
          %172 = sbr.rel (%p170) target = $region16
        $region15: #{autoencoder_forward.1} parent=11 // pred_region
          %s174 = ssub.s32 4096, 4096
          %175 = vsyncadd [#allocation6], %s174
          %s176 = sshll.u32 [#allocation5], 4
          %s177 = int_to_ptr.vmem [resolvable:$true] %s176
          %182 = dma.hbm_to_vmem [thread:$0]  %s1, 4096, %s177, [#allocation6], 128, 128, 8
        $region16: #{autoencoder_forward.1} parent=11 // pred_fallthru
          _
        // Predicated region
        $region17: #{autoencoder_forward.1} parent=11 // pred_check
          %p183 = pneg %p87
        $region18: #{autoencoder_forward.1} parent=11 // pred_check_branch
          %185 = sbr.rel (%p183) target = $region20
        $region19: #{autoencoder_forward.1} parent=11 // pred_region
          %s187 = ssub.s32 16, 16
          %188 = vsyncadd [#allocation6], %s187
          %s190 = sshll.u32 [#allocation7], 4
          %s191 = int_to_ptr.vmem [resolvable:$true] %s190
          %193 = dma.hbm_to_vmem [thread:$0]  %s2, 16, %s191, [#allocation6]
        $region20: #{autoencoder_forward.1} parent=11 // pred_fallthru
          _
        // Predicated region
        $region21: #{autoencoder_forward.1} parent=11 // pred_check
          %p194 = pneg %p108
        $region22: #{autoencoder_forward.1} parent=11 // pred_check_branch
          %196 = sbr.rel (%p194) target = $region24
        $region23: #{autoencoder_forward.1} parent=11 // pred_region
          %s198 = ssub.s32 4096, 4096
          %199 = vsyncadd [#allocation9], %s198
          %s200 = sshll.u32 [#allocation8], 4
          %s201 = int_to_ptr.vmem [resolvable:$true] %s200
          %206 = dma.hbm_to_vmem [thread:$0]  %s3, 4096, %s201, [#allocation9], 256, 256, 16
        $region24: #{autoencoder_forward.1} parent=11 // pred_fallthru
          _
        // Predicated region
        $region25: #{autoencoder_forward.1} parent=11 // pred_check
          %p207 = pneg %p129
        $region26: #{autoencoder_forward.1} parent=11 // pred_check_branch
          %209 = sbr.rel (%p207) target = $region28
        $region27: #{autoencoder_forward.1} parent=11 // pred_region
          %s211 = ssub.s32 32, 32
          %212 = vsyncadd [#allocation9], %s211
          %s214 = sshll.u32 [#allocation10], 4
          %s215 = int_to_ptr.vmem [resolvable:$true] %s214
          %217 = dma.hbm_to_vmem [thread:$0]  %s4, 32, %s215, [#allocation9]
        $region28: #{autoencoder_forward.1} parent=11 // pred_fallthru
          _
      $region12: #{autoencoder_forward.1} parent=5 // pred_fallthru
        _
      %p218 = scmp.lt.s32.totalorder %s19, 2
      // Predicated region
      $region29: #{autoencoder_forward.1} parent=5 // pred_check
        %p219 = pneg %p218
      $region30: #{autoencoder_forward.1} parent=5 // pred_check_branch
        %221 = sbr.rel (%p219) target = $region32
      $region31: #{autoencoder_forward.1} parent=5 // pred_region
        // Predicated region
        $region33: #{autoencoder_forward.1} parent=31 // pred_check
          %p222 = pneg %p39
        $region34: #{autoencoder_forward.1} parent=31 // pred_check_branch
          %224 = sbr.rel (%p222) target = $region36
        $region35: #{autoencoder_forward.1} parent=31 // pred_region
          %s225 = sand.u32 %s29, 1
          %s226 = scalar_lea.sflag [#allocation3], %s225
          %s227 = sand.u32 %s29, 1
          %s228 = smul.addr %s227, 256
          %s229 = scalar_lea.vmem [#allocation2], %s228
          %s230 = smul.u32 16, %s19
          %s232 = ssub.s32 4096, 4096
          %233 = vsyncadd %s226, %s232
          %s234 = smul.addr %s230, 2
          %s235 = smul.addr %s234, 128
          %s236 = scalar_lea.hbm %s0, %s235
          %s237 = sshll.u32 %s229, 4
          %s238 = int_to_ptr.vmem [resolvable:$true] %s237
          %243 = dma.hbm_to_vmem [thread:$0]  %s236, 4096, %s238, %s226, 256, 256, 16
        $region36: #{autoencoder_forward.1} parent=31 // pred_fallthru
          _
      $region32: #{autoencoder_forward.1} parent=5 // pred_fallthru
        _
      %p244 = scmp.le.s32.totalorder 1, %s19
      %p245 = scmp.lt.s32.totalorder %s19, 3
      %p246 = pnand %p244, %p245
      %p247 = pneg %p246
      // Predicated region
      $region37: #{autoencoder_forward.1} parent=5 // pred_check
        _
      $region38: #{autoencoder_forward.1} parent=5 // pred_check_branch
        %249 = sbr.rel (%p246) target = $region40
      $region39: #{autoencoder_forward.1} parent=5 // pred_region
        %s250 = ssub.s32 %s19, 1
        %s251 = sand.u32 %s32, 1
        %s252 = scalar_lea.sflag [#allocation3], %s251
        %s253 = sand.u32 %s32, 1
        %s254 = smul.addr %s253, 256
        %s255 = scalar_lea.vmem [#allocation2], %s254
        // Predicated region
        $region41: #{autoencoder_forward.1} parent=39 // pred_check
          %p256 = pneg %p45
        $region42: #{autoencoder_forward.1} parent=39 // pred_check_branch
          %258 = sbr.rel (%p256) target = $region44
        $region43: #{autoencoder_forward.1} parent=39 // pred_region
          %259 = dma.done %s252, 4096
        $region44: #{autoencoder_forward.1} parent=39 // pred_fallthru
          _
        // Predicated region
        $region45: #{autoencoder_forward.1} parent=39 // pred_check
          %p260 = pneg %p66
        $region46: #{autoencoder_forward.1} parent=39 // pred_check_branch
          %262 = sbr.rel (%p260) target = $region48
        $region47: #{autoencoder_forward.1} parent=39 // pred_region
          %263 = dma.done [#allocation6], 4096
        $region48: #{autoencoder_forward.1} parent=39 // pred_fallthru
          _
        // Predicated region
        $region49: #{autoencoder_forward.1} parent=39 // pred_check
          %p264 = pneg %p87
        $region50: #{autoencoder_forward.1} parent=39 // pred_check_branch
          %266 = sbr.rel (%p264) target = $region52
        $region51: #{autoencoder_forward.1} parent=39 // pred_region
          %267 = dma.done [#allocation6], 16
        $region52: #{autoencoder_forward.1} parent=39 // pred_fallthru
          _
        // Predicated region
        $region53: #{autoencoder_forward.1} parent=39 // pred_check
          %p268 = pneg %p108
        $region54: #{autoencoder_forward.1} parent=39 // pred_check_branch
          %270 = sbr.rel (%p268) target = $region56
        $region55: #{autoencoder_forward.1} parent=39 // pred_region
          %271 = dma.done [#allocation9], 4096
        $region56: #{autoencoder_forward.1} parent=39 // pred_fallthru
          _
        // Predicated region
        $region57: #{autoencoder_forward.1} parent=39 // pred_check
          %p272 = pneg %p129
        $region58: #{autoencoder_forward.1} parent=39 // pred_check_branch
          %274 = sbr.rel (%p272) target = $region60
        $region59: #{autoencoder_forward.1} parent=39 // pred_region
          %275 = dma.done [#allocation9], 32
        $region60: #{autoencoder_forward.1} parent=39 // pred_fallthru
          _
        %s276 = sand.u32 %s32, 1
        %s277 = scalar_lea.sflag [#allocation3], %s276
        %s278 = sand.u32 %s32, 1
        %s279 = smul.addr %s278, 256
        %s280 = scalar_lea.vmem [#allocation2], %s279
        %p281 = pneg %p45
        %p282 = pneg %p42
        %p283 = pneg %p66
        %p284 = pneg %p63
        %p285 = pneg %p87
        %p286 = pneg %p84
        %p287 = pneg %p108
        %p288 = pneg %p105
        %p289 = pneg %p129
        %p290 = pneg %p126
        %p291 = pneg %p155
        %p292 = pneg %p152
        %s293 = sand.u32 %s142, 1
        %s294 = scalar_lea.sflag [#allocation4], %s293
        %s295 = sand.u32 %s142, 1
        %s296 = smul.addr %s295, 256
        %s297 = scalar_lea.vmem [#allocation11], %s296
        %s298 = smul.u32 16, %s24
        %s299 = smul.u32 16, %s24
        %v300 = vld [vmem:[%s255] sm:$0xff]
        %v301 = vld [vmem:[%s255 + $0x8] sm:$0xff]
        %v302 = vld [vmem:[%s255 + $0x10] sm:$0xff]
        %v303 = vld [vmem:[%s255 + $0x18] sm:$0xff]
        %v304 = vld [vmem:[%s255 + $0x20] sm:$0xff]
        %v305 = vld [vmem:[%s255 + $0x28] sm:$0xff]
        %v306 = vld [vmem:[%s255 + $0x30] sm:$0xff]
        %v307 = vld [vmem:[%s255 + $0x38] sm:$0xff]
        %v308 = vld [vmem:[%s255 + $0x40] sm:$0xff]
        %v309 = vld [vmem:[%s255 + $0x48] sm:$0xff]
        %v310 = vld [vmem:[%s255 + $0x50] sm:$0xff]
        %v311 = vld [vmem:[%s255 + $0x58] sm:$0xff]
        %v312 = vld [vmem:[%s255 + $0x60] sm:$0xff]
        %v313 = vld [vmem:[%s255 + $0x68] sm:$0xff]
        %v314 = vld [vmem:[%s255 + $0x70] sm:$0xff]
        %v315 = vld [vmem:[%s255 + $0x78] sm:$0xff]
        %v316 = vld [vmem:[%s255 + $0x80] sm:$0xff]
        %v317 = vld [vmem:[%s255 + $0x88] sm:$0xff]
        %v318 = vld [vmem:[%s255 + $0x90] sm:$0xff]
        %v319 = vld [vmem:[%s255 + $0x98] sm:$0xff]
        %v320 = vld [vmem:[%s255 + $0xa0] sm:$0xff]
        %v321 = vld [vmem:[%s255 + $0xa8] sm:$0xff]
        %v322 = vld [vmem:[%s255 + $0xb0] sm:$0xff]
        %v323 = vld [vmem:[%s255 + $0xb8] sm:$0xff]
        %v324 = vld [vmem:[%s255 + $0xc0] sm:$0xff]
        %v325 = vld [vmem:[%s255 + $0xc8] sm:$0xff]
        %v326 = vld [vmem:[%s255 + $0xd0] sm:$0xff]
        %v327 = vld [vmem:[%s255 + $0xd8] sm:$0xff]
        %v328 = vld [vmem:[%s255 + $0xe0] sm:$0xff]
        %v329 = vld [vmem:[%s255 + $0xe8] sm:$0xff]
        %v330 = vld [vmem:[%s255 + $0xf0] sm:$0xff]
        %v331 = vld [vmem:[%s255 + $0xf8] sm:$0xff]
        %v332 = vld [vmem:[#allocation5] sm:$0xff]
        %v333 = vld [vmem:[#allocation5 + $0x8] sm:$0xff]
        %v334 = vld [vmem:[#allocation5 + $0x10] sm:$0xff]
        %v335 = vld [vmem:[#allocation5 + $0x18] sm:$0xff]
        %v336 = vld [vmem:[#allocation5 + $0x20] sm:$0xff]
        %v337 = vld [vmem:[#allocation5 + $0x28] sm:$0xff]
        %v338 = vld [vmem:[#allocation5 + $0x30] sm:$0xff]
        %v339 = vld [vmem:[#allocation5 + $0x38] sm:$0xff]
        %v340 = vld [vmem:[#allocation5 + $0x40] sm:$0xff]
        %v341 = vld [vmem:[#allocation5 + $0x48] sm:$0xff]
        %v342 = vld [vmem:[#allocation5 + $0x50] sm:$0xff]
        %v343 = vld [vmem:[#allocation5 + $0x58] sm:$0xff]
        %v344 = vld [vmem:[#allocation5 + $0x60] sm:$0xff]
        %v345 = vld [vmem:[#allocation5 + $0x68] sm:$0xff]
        %v346 = vld [vmem:[#allocation5 + $0x70] sm:$0xff]
        %v347 = vld [vmem:[#allocation5 + $0x78] sm:$0xff]
        %v348 = vld [vmem:[#allocation5 + $0x80] sm:$0xff]
        %v349 = vld [vmem:[#allocation5 + $0x88] sm:$0xff]
        %v350 = vld [vmem:[#allocation5 + $0x90] sm:$0xff]
        %v351 = vld [vmem:[#allocation5 + $0x98] sm:$0xff]
        %v352 = vld [vmem:[#allocation5 + $0xa0] sm:$0xff]
        %v353 = vld [vmem:[#allocation5 + $0xa8] sm:$0xff]
        %v354 = vld [vmem:[#allocation5 + $0xb0] sm:$0xff]
        %v355 = vld [vmem:[#allocation5 + $0xb8] sm:$0xff]
        %v356 = vld [vmem:[#allocation5 + $0xc0] sm:$0xff]
        %v357 = vld [vmem:[#allocation5 + $0xc8] sm:$0xff]
        %v358 = vld [vmem:[#allocation5 + $0xd0] sm:$0xff]
        %v359 = vld [vmem:[#allocation5 + $0xd8] sm:$0xff]
        %v360 = vld [vmem:[#allocation5 + $0xe0] sm:$0xff]
        %v361 = vld [vmem:[#allocation5 + $0xe8] sm:$0xff]
        %v362 = vld [vmem:[#allocation5 + $0xf0] sm:$0xff]
        %v363 = vld [vmem:[#allocation5 + $0xf8] sm:$0xff]
        %v364 = vld [vmem:[#allocation7] sm:$0x1]
        %v366 = vlaneseq
        %v367 = vshrl.u32 %v366, 7
        %v368 = vsub.s32 0, %v367
        %v369 = vrot.slane %v364, %v368
        %371 = vmatprep.subr.mxu0 0.0
        %372 = vmatpush1.msra.mxu0 %v332
        %373 = vmatprep.subr.mxu0 0.0
        %374 = vmatpush1.msra.mxu0 %v333
        %375 = vmatprep.subr.mxu0 0.0
        %376 = vmatpush1.msra.mxu0 %v334
        %377 = vmatprep.subr.mxu0 0.0
        %378 = vmatpush1.msra.mxu0 %v335
        %379 = vmatprep.subr.mxu0 0.0
        %380 = vmatpush1.msra.mxu0 %v336
        %381 = vmatprep.subr.mxu0 0.0
        %382 = vmatpush1.msra.mxu0 %v337
        %383 = vmatprep.subr.mxu0 0.0
        %384 = vmatpush1.msra.mxu0 %v338
        %385 = vmatprep.subr.mxu0 0.0
        %386 = vmatpush1.msra.mxu0 %v339
        %387 = vmatprep.subr.mxu0 0.0
        %388 = vmatpush1.msra.mxu0 %v340
        %389 = vmatprep.subr.mxu0 0.0
        %390 = vmatpush1.msra.mxu0 %v341
        %391 = vmatprep.subr.mxu0 0.0
        %392 = vmatpush1.msra.mxu0 %v342
        %393 = vmatprep.subr.mxu0 0.0
        %394 = vmatpush1.msra.mxu0 %v343
        %395 = vmatprep.subr.mxu0 0.0
        %396 = vmatpush1.msra.mxu0 %v344
        %397 = vmatprep.subr.mxu0 0.0
        %398 = vmatpush1.msra.mxu0 %v345
        %399 = vmatprep.subr.mxu0 0.0
        %400 = vmatpush1.msra.mxu0 %v346
        %401 = vmatprep.subr.mxu0 0.0
        %402 = vmatpush1.msra.mxu0 %v347
        %403 = vmatprep.subr.mxu0 0.0
        %404 = vmatpush1.msra.mxu0 %v348
        %405 = vmatprep.subr.mxu0 0.0
        %406 = vmatpush1.msra.mxu0 %v349
        %407 = vmatprep.subr.mxu0 0.0
        %408 = vmatpush1.msra.mxu0 %v350
        %409 = vmatprep.subr.mxu0 0.0
        %410 = vmatpush1.msra.mxu0 %v351
        %411 = vmatprep.subr.mxu0 0.0
        %412 = vmatpush1.msra.mxu0 %v352
        %413 = vmatprep.subr.mxu0 0.0
        %414 = vmatpush1.msra.mxu0 %v353
        %415 = vmatprep.subr.mxu0 0.0
        %416 = vmatpush1.msra.mxu0 %v354
        %417 = vmatprep.subr.mxu0 0.0
        %418 = vmatpush1.msra.mxu0 %v355
        %419 = vmatprep.subr.mxu0 0.0
        %420 = vmatpush1.msra.mxu0 %v356
        %421 = vmatprep.subr.mxu0 0.0
        %422 = vmatpush1.msra.mxu0 %v357
        %423 = vmatprep.subr.mxu0 0.0
        %424 = vmatpush1.msra.mxu0 %v358
        %425 = vmatprep.subr.mxu0 0.0
        %426 = vmatpush1.msra.mxu0 %v359
        %427 = vmatprep.subr.mxu0 0.0
        %428 = vmatpush1.msra.mxu0 %v360
        %429 = vmatprep.subr.mxu0 0.0
        %430 = vmatpush1.msra.mxu0 %v361
        %431 = vmatprep.subr.mxu0 0.0
        %432 = vmatpush1.msra.mxu0 %v362
        %433 = vmatprep.subr.mxu0 0.0
        %434 = vmatpush1.msra.mxu0 %v363
        %435 = vmatprep.mubr.f32.mxu0 %v301
        %436 = vmatmul.mubr.f32.gmra.mrb[0].mxu0 %v300
        %v437 = vpop.f32.mrb[0].mxu0
        %v438 = vadd.f32 %v369, %v437
        %v439 = vpop.f32.mrb[0].mxu0
        %440 = vmatprep.mubr.f32.mxu0 %v303
        %441 = vmatmul.mubr.f32.gmra.mrb[0].mxu0 %v302
        %v442 = vpop.f32.mrb[0].mxu0
        %v443 = vadd.f32 %v369, %v442
        %v444 = vpop.f32.mrb[0].mxu0
        %445 = vmatprep.mubr.f32.mxu0 %v305
        %446 = vmatmul.mubr.f32.gmra.mrb[0].mxu0 %v304
        %v447 = vpop.f32.mrb[0].mxu0
        %v448 = vadd.f32 %v369, %v447
        %v449 = vpop.f32.mrb[0].mxu0
        %450 = vmatprep.mubr.f32.mxu0 %v307
        %451 = vmatmul.mubr.f32.gmra.mrb[0].mxu0 %v306
        %v452 = vpop.f32.mrb[0].mxu0
        %v453 = vadd.f32 %v369, %v452
        %v454 = vpop.f32.mrb[0].mxu0
        %455 = vmatprep.mubr.f32.mxu0 %v309
        %456 = vmatmul.mubr.f32.gmra.mrb[0].mxu0 %v308
        %v457 = vpop.f32.mrb[0].mxu0
        %v458 = vadd.f32 %v369, %v457
        %v459 = vpop.f32.mrb[0].mxu0
        %460 = vmatprep.mubr.f32.mxu0 %v311
        %461 = vmatmul.mubr.f32.gmra.mrb[0].mxu0 %v310
        %v462 = vpop.f32.mrb[0].mxu0
        %v463 = vadd.f32 %v369, %v462
        %v464 = vpop.f32.mrb[0].mxu0
        %465 = vmatprep.mubr.f32.mxu0 %v313
        %466 = vmatmul.mubr.f32.gmra.mrb[0].mxu0 %v312
        %v467 = vpop.f32.mrb[0].mxu0
        %v468 = vadd.f32 %v369, %v467
        %v469 = vpop.f32.mrb[0].mxu0
        %470 = vmatprep.mubr.f32.mxu0 %v315
        %471 = vmatmul.mubr.f32.gmra.mrb[0].mxu0 %v314
        %v472 = vpop.f32.mrb[0].mxu0
        %v473 = vadd.f32 %v369, %v472
        %v474 = vpop.f32.mrb[0].mxu0
        %475 = vmatprep.mubr.f32.mxu0 %v317
        %476 = vmatmul.mubr.f32.gmra.mrb[0].mxu0 %v316
        %v477 = vpop.f32.mrb[0].mxu0
        %v478 = vadd.f32 %v369, %v477
        %v479 = vpop.f32.mrb[0].mxu0
        %480 = vmatprep.mubr.f32.mxu0 %v319
        %481 = vmatmul.mubr.f32.gmra.mrb[0].mxu0 %v318
        %v482 = vpop.f32.mrb[0].mxu0
        %v483 = vadd.f32 %v369, %v482
        %v484 = vpop.f32.mrb[0].mxu0
        %485 = vmatprep.mubr.f32.mxu0 %v321
        %486 = vmatmul.mubr.f32.gmra.mrb[0].mxu0 %v320
        %v487 = vpop.f32.mrb[0].mxu0
        %v488 = vadd.f32 %v369, %v487
        %v489 = vpop.f32.mrb[0].mxu0
        %490 = vmatprep.mubr.f32.mxu0 %v323
        %491 = vmatmul.mubr.f32.gmra.mrb[0].mxu0 %v322
        %v492 = vpop.f32.mrb[0].mxu0
        %v493 = vadd.f32 %v369, %v492
        %v494 = vpop.f32.mrb[0].mxu0
        %495 = vmatprep.mubr.f32.mxu0 %v325
        %496 = vmatmul.mubr.f32.gmra.mrb[0].mxu0 %v324
        %v497 = vpop.f32.mrb[0].mxu0
        %v498 = vadd.f32 %v369, %v497
        %v499 = vpop.f32.mrb[0].mxu0
        %500 = vmatprep.mubr.f32.mxu0 %v327
        %501 = vmatmul.mubr.f32.gmra.mrb[0].mxu0 %v326
        %v502 = vpop.f32.mrb[0].mxu0
        %v503 = vadd.f32 %v369, %v502
        %v504 = vpop.f32.mrb[0].mxu0
        %505 = vmatprep.mubr.f32.mxu0 %v329
        %506 = vmatmul.mubr.f32.gmra.mrb[0].mxu0 %v328
        %v507 = vpop.f32.mrb[0].mxu0
        %v508 = vadd.f32 %v369, %v507
        %v509 = vpop.f32.mrb[0].mxu0
        %510 = vmatprep.mubr.f32.mxu0 %v331
        %511 = vmatmul.mubr.f32.gmra.mrb[0].mxu0 %v330
        %v512 = vpop.f32.mrb[0].mxu0
        %v513 = vadd.f32 %v369, %v512
        %v514 = vpop.f32.mrb[0].mxu0
        %515 = vdwg.mxu0
        %v516 = vmax.f32 %v438, 0.0
        %v517 = vmax.f32 %v443, 0.0
        %v518 = vmax.f32 %v448, 0.0
        %v519 = vmax.f32 %v453, 0.0
        %v520 = vmax.f32 %v458, 0.0
        %v521 = vmax.f32 %v463, 0.0
        %v522 = vmax.f32 %v468, 0.0
        %v523 = vmax.f32 %v473, 0.0
        %v524 = vmax.f32 %v478, 0.0
        %v525 = vmax.f32 %v483, 0.0
        %v526 = vmax.f32 %v488, 0.0
        %v527 = vmax.f32 %v493, 0.0
        %v528 = vmax.f32 %v498, 0.0
        %v529 = vmax.f32 %v503, 0.0
        %v530 = vmax.f32 %v508, 0.0
        %v531 = vmax.f32 %v513, 0.0
        %v532 = vld [vmem:[#allocation8] sm:$0xff]
        %v533 = vld [vmem:[#allocation8 + $0x8] sm:$0xff]
        %v534 = vld [vmem:[#allocation8 + $0x10] sm:$0xff]
        %v535 = vld [vmem:[#allocation8 + $0x18] sm:$0xff]
        %v536 = vld [vmem:[#allocation8 + $0x20] sm:$0xff]
        %v537 = vld [vmem:[#allocation8 + $0x28] sm:$0xff]
        %v538 = vld [vmem:[#allocation8 + $0x30] sm:$0xff]
        %v539 = vld [vmem:[#allocation8 + $0x38] sm:$0xff]
        %v540 = vld [vmem:[#allocation8 + $0x40] sm:$0xff]
        %v541 = vld [vmem:[#allocation8 + $0x48] sm:$0xff]
        %v542 = vld [vmem:[#allocation8 + $0x50] sm:$0xff]
        %v543 = vld [vmem:[#allocation8 + $0x58] sm:$0xff]
        %v544 = vld [vmem:[#allocation8 + $0x60] sm:$0xff]
        %v545 = vld [vmem:[#allocation8 + $0x68] sm:$0xff]
        %v546 = vld [vmem:[#allocation8 + $0x70] sm:$0xff]
        %v547 = vld [vmem:[#allocation8 + $0x78] sm:$0xff]
        %v548 = vld [vmem:[#allocation8 + $0x80] sm:$0xff]
        %v549 = vld [vmem:[#allocation8 + $0x88] sm:$0xff]
        %v550 = vld [vmem:[#allocation8 + $0x90] sm:$0xff]
        %v551 = vld [vmem:[#allocation8 + $0x98] sm:$0xff]
        %v552 = vld [vmem:[#allocation8 + $0xa0] sm:$0xff]
        %v553 = vld [vmem:[#allocation8 + $0xa8] sm:$0xff]
        %v554 = vld [vmem:[#allocation8 + $0xb0] sm:$0xff]
        %v555 = vld [vmem:[#allocation8 + $0xb8] sm:$0xff]
        %v556 = vld [vmem:[#allocation8 + $0xc0] sm:$0xff]
        %v557 = vld [vmem:[#allocation8 + $0xc8] sm:$0xff]
        %v558 = vld [vmem:[#allocation8 + $0xd0] sm:$0xff]
        %v559 = vld [vmem:[#allocation8 + $0xd8] sm:$0xff]
        %v560 = vld [vmem:[#allocation8 + $0xe0] sm:$0xff]
        %v561 = vld [vmem:[#allocation8 + $0xe8] sm:$0xff]
        %v562 = vld [vmem:[#allocation8 + $0xf0] sm:$0xff]
        %v563 = vld [vmem:[#allocation8 + $0xf8] sm:$0xff]
        %v564 = vld [vmem:[#allocation10] sm:$0x3]
        %v566 = vlaneseq
        %v567 = vshrl.u32 %v566, 7
        %v568 = vsub.s32 0, %v567
        %v569 = vrot.slane %v564, %v568
        %v570 = vlaneseq
        %v571 = vshrl.u32 %v570, 7
        %v572 = vsub.s32 1, %v571
        %v573 = vrot.slane %v564, %v572
        %576 = vmatprep.subr.mxu0 %v533
        %577 = vmatpush1.msra.mxu0 %v532
        %578 = vmatprep.subr.mxu0 %v535
        %579 = vmatpush1.msra.mxu0 %v534
        %580 = vmatprep.subr.mxu0 %v537
        %581 = vmatpush1.msra.mxu0 %v536
        %582 = vmatprep.subr.mxu0 %v539
        %583 = vmatpush1.msra.mxu0 %v538
        %584 = vmatprep.subr.mxu0 %v541
        %585 = vmatpush1.msra.mxu0 %v540
        %586 = vmatprep.subr.mxu0 %v543
        %587 = vmatpush1.msra.mxu0 %v542
        %588 = vmatprep.subr.mxu0 %v545
        %589 = vmatpush1.msra.mxu0 %v544
        %590 = vmatprep.subr.mxu0 %v547
        %591 = vmatpush1.msra.mxu0 %v546
        %592 = vmatprep.subr.mxu0 %v549
        %593 = vmatpush1.msra.mxu0 %v548
        %594 = vmatprep.subr.mxu0 %v551
        %595 = vmatpush1.msra.mxu0 %v550
        %596 = vmatprep.subr.mxu0 %v553
        %597 = vmatpush1.msra.mxu0 %v552
        %598 = vmatprep.subr.mxu0 %v555
        %599 = vmatpush1.msra.mxu0 %v554
        %600 = vmatprep.subr.mxu0 %v557
        %601 = vmatpush1.msra.mxu0 %v556
        %602 = vmatprep.subr.mxu0 %v559
        %603 = vmatpush1.msra.mxu0 %v558
        %604 = vmatprep.subr.mxu0 %v561
        %605 = vmatpush1.msra.mxu0 %v560
        %606 = vmatprep.subr.mxu0 %v563
        %607 = vmatpush1.msra.mxu0 %v562
        %608 = vmatprep.subr.mxu0 0.0
        %609 = vmatpush1.msra.mxu0 0.0
        %610 = vmatprep.subr.mxu0 0.0
        %611 = vmatpush1.msra.mxu0 0.0
        %612 = vmatprep.subr.mxu0 0.0
        %613 = vmatpush1.msra.mxu0 0.0
        %614 = vmatprep.subr.mxu0 0.0
        %615 = vmatpush1.msra.mxu0 0.0
        %616 = vmatprep.subr.mxu0 0.0
        %617 = vmatpush1.msra.mxu0 0.0
        %618 = vmatprep.subr.mxu0 0.0
        %619 = vmatpush1.msra.mxu0 0.0
        %620 = vmatprep.subr.mxu0 0.0
        %621 = vmatpush1.msra.mxu0 0.0
        %622 = vmatprep.subr.mxu0 0.0
        %623 = vmatpush1.msra.mxu0 0.0
        %624 = vmatprep.subr.mxu0 0.0
        %625 = vmatpush1.msra.mxu0 0.0
        %626 = vmatprep.subr.mxu0 0.0
        %627 = vmatpush1.msra.mxu0 0.0
        %628 = vmatprep.subr.mxu0 0.0
        %629 = vmatpush1.msra.mxu0 0.0
        %630 = vmatprep.subr.mxu0 0.0
        %631 = vmatpush1.msra.mxu0 0.0
        %632 = vmatprep.subr.mxu0 0.0
        %633 = vmatpush1.msra.mxu0 0.0
        %634 = vmatprep.subr.mxu0 0.0
        %635 = vmatpush1.msra.mxu0 0.0
        %636 = vmatprep.subr.mxu0 0.0
        %637 = vmatpush1.msra.mxu0 0.0
        %638 = vmatprep.subr.mxu0 0.0
        %639 = vmatpush1.msra.mxu0 0.0
        %640 = vmatprep.mubr.f32.mxu0 0.0
        %641 = vmatmul.mubr.f32.gmra.mrb[0].mxu0 %v516
        %v642 = vpop.f32.mrb[0].mxu0
        %v643 = vadd.f32 %v569, %v642
        %v644 = vpop.f32.mrb[0].mxu0
        %v645 = vadd.f32 %v573, %v644
        %646 = vmatprep.mubr.f32.mxu0 0.0
        %647 = vmatmul.mubr.f32.gmra.mrb[0].mxu0 %v517
        %v648 = vpop.f32.mrb[0].mxu0
        %v649 = vadd.f32 %v569, %v648
        %v650 = vpop.f32.mrb[0].mxu0
        %v651 = vadd.f32 %v573, %v650
        %652 = vmatprep.mubr.f32.mxu0 0.0
        %653 = vmatmul.mubr.f32.gmra.mrb[0].mxu0 %v518
        %v654 = vpop.f32.mrb[0].mxu0
        %v655 = vadd.f32 %v569, %v654
        %v656 = vpop.f32.mrb[0].mxu0
        %v657 = vadd.f32 %v573, %v656
        %658 = vmatprep.mubr.f32.mxu0 0.0
        %659 = vmatmul.mubr.f32.gmra.mrb[0].mxu0 %v519
        %v660 = vpop.f32.mrb[0].mxu0
        %v661 = vadd.f32 %v569, %v660
        %v662 = vpop.f32.mrb[0].mxu0
        %v663 = vadd.f32 %v573, %v662
        %664 = vmatprep.mubr.f32.mxu0 0.0
        %665 = vmatmul.mubr.f32.gmra.mrb[0].mxu0 %v520
        %v666 = vpop.f32.mrb[0].mxu0
        %v667 = vadd.f32 %v569, %v666
        %v668 = vpop.f32.mrb[0].mxu0
        %v669 = vadd.f32 %v573, %v668
        %670 = vmatprep.mubr.f32.mxu0 0.0
        %671 = vmatmul.mubr.f32.gmra.mrb[0].mxu0 %v521
        %v672 = vpop.f32.mrb[0].mxu0
        %v673 = vadd.f32 %v569, %v672
        %v674 = vpop.f32.mrb[0].mxu0
        %v675 = vadd.f32 %v573, %v674
        %676 = vmatprep.mubr.f32.mxu0 0.0
        %677 = vmatmul.mubr.f32.gmra.mrb[0].mxu0 %v522
        %v678 = vpop.f32.mrb[0].mxu0
        %v679 = vadd.f32 %v569, %v678
        %v680 = vpop.f32.mrb[0].mxu0
        %v681 = vadd.f32 %v573, %v680
        %682 = vmatprep.mubr.f32.mxu0 0.0
        %683 = vmatmul.mubr.f32.gmra.mrb[0].mxu0 %v523
        %v684 = vpop.f32.mrb[0].mxu0
        %v685 = vadd.f32 %v569, %v684
        %v686 = vpop.f32.mrb[0].mxu0
        %v687 = vadd.f32 %v573, %v686
        %688 = vmatprep.mubr.f32.mxu0 0.0
        %689 = vmatmul.mubr.f32.gmra.mrb[0].mxu0 %v524
        %v690 = vpop.f32.mrb[0].mxu0
        %v691 = vadd.f32 %v569, %v690
        %v692 = vpop.f32.mrb[0].mxu0
        %v693 = vadd.f32 %v573, %v692
        %694 = vmatprep.mubr.f32.mxu0 0.0
        %695 = vmatmul.mubr.f32.gmra.mrb[0].mxu0 %v525
        %v696 = vpop.f32.mrb[0].mxu0
        %v697 = vadd.f32 %v569, %v696
        %v698 = vpop.f32.mrb[0].mxu0
        %v699 = vadd.f32 %v573, %v698
        %700 = vmatprep.mubr.f32.mxu0 0.0
        %701 = vmatmul.mubr.f32.gmra.mrb[0].mxu0 %v526
        %v702 = vpop.f32.mrb[0].mxu0
        %v703 = vadd.f32 %v569, %v702
        %v704 = vpop.f32.mrb[0].mxu0
        %v705 = vadd.f32 %v573, %v704
        %706 = vmatprep.mubr.f32.mxu0 0.0
        %707 = vmatmul.mubr.f32.gmra.mrb[0].mxu0 %v527
        %v708 = vpop.f32.mrb[0].mxu0
        %v709 = vadd.f32 %v569, %v708
        %v710 = vpop.f32.mrb[0].mxu0
        %v711 = vadd.f32 %v573, %v710
        %712 = vmatprep.mubr.f32.mxu0 0.0
        %713 = vmatmul.mubr.f32.gmra.mrb[0].mxu0 %v528
        %v714 = vpop.f32.mrb[0].mxu0
        %v715 = vadd.f32 %v569, %v714
        %v716 = vpop.f32.mrb[0].mxu0
        %v717 = vadd.f32 %v573, %v716
        %718 = vmatprep.mubr.f32.mxu0 0.0
        %719 = vmatmul.mubr.f32.gmra.mrb[0].mxu0 %v529
        %v720 = vpop.f32.mrb[0].mxu0
        %v721 = vadd.f32 %v569, %v720
        %v722 = vpop.f32.mrb[0].mxu0
        %v723 = vadd.f32 %v573, %v722
        %724 = vmatprep.mubr.f32.mxu0 0.0
        %725 = vmatmul.mubr.f32.gmra.mrb[0].mxu0 %v530
        %v726 = vpop.f32.mrb[0].mxu0
        %v727 = vadd.f32 %v569, %v726
        %v728 = vpop.f32.mrb[0].mxu0
        %v729 = vadd.f32 %v573, %v728
        %730 = vmatprep.mubr.f32.mxu0 0.0
        %731 = vmatmul.mubr.f32.gmra.mrb[0].mxu0 %v531
        %v732 = vpop.f32.mrb[0].mxu0
        %v733 = vadd.f32 %v569, %v732
        %v734 = vpop.f32.mrb[0].mxu0
        %v735 = vadd.f32 %v573, %v734
        %736 = vdwg.mxu0
        %v737 = vxor.u32 %v643, 2147483648
        %v738 = vxor.u32 %v645, 2147483648
        %v739 = vxor.u32 %v649, 2147483648
        %v740 = vxor.u32 %v651, 2147483648
        %v741 = vxor.u32 %v655, 2147483648
        %v742 = vxor.u32 %v657, 2147483648
        %v743 = vxor.u32 %v661, 2147483648
        %v744 = vxor.u32 %v663, 2147483648
        %v745 = vxor.u32 %v667, 2147483648
        %v746 = vxor.u32 %v669, 2147483648
        %v747 = vxor.u32 %v673, 2147483648
        %v748 = vxor.u32 %v675, 2147483648
        %v749 = vxor.u32 %v679, 2147483648
        %v750 = vxor.u32 %v681, 2147483648
        %v751 = vxor.u32 %v685, 2147483648
        %v752 = vxor.u32 %v687, 2147483648
        %v753 = vxor.u32 %v691, 2147483648
        %v754 = vxor.u32 %v693, 2147483648
        %v755 = vxor.u32 %v697, 2147483648
        %v756 = vxor.u32 %v699, 2147483648
        %v757 = vxor.u32 %v703, 2147483648
        %v758 = vxor.u32 %v705, 2147483648
        %v759 = vxor.u32 %v709, 2147483648
        %v760 = vxor.u32 %v711, 2147483648
        %v761 = vxor.u32 %v715, 2147483648
        %v762 = vxor.u32 %v717, 2147483648
        %v763 = vxor.u32 %v721, 2147483648
        %v764 = vxor.u32 %v723, 2147483648
        %v765 = vxor.u32 %v727, 2147483648
        %v766 = vxor.u32 %v729, 2147483648
        %v767 = vxor.u32 %v733, 2147483648
        %v768 = vxor.u32 %v735, 2147483648
        %v769 = vmul.f32 %v737, 1.442695
        %v770 = vpow.pop %v769
        %v771 = vmul.f32 %v738, 1.442695
        %v772 = vpow.pop %v771
        %v773 = vmul.f32 %v739, 1.442695
        %v774 = vpow.pop %v773
        %v775 = vmul.f32 %v740, 1.442695
        %v776 = vpow.pop %v775
        %v777 = vmul.f32 %v741, 1.442695
        %v778 = vpow.pop %v777
        %v779 = vmul.f32 %v742, 1.442695
        %v780 = vpow.pop %v779
        %v781 = vmul.f32 %v743, 1.442695
        %v782 = vpow.pop %v781
        %v783 = vmul.f32 %v744, 1.442695
        %v784 = vpow.pop %v783
        %v785 = vmul.f32 %v745, 1.442695
        %v786 = vpow.pop %v785
        %v787 = vmul.f32 %v746, 1.442695
        %v788 = vpow.pop %v787
        %v789 = vmul.f32 %v747, 1.442695
        %v790 = vpow.pop %v789
        %v791 = vmul.f32 %v748, 1.442695
        %v792 = vpow.pop %v791
        %v793 = vmul.f32 %v749, 1.442695
        %v794 = vpow.pop %v793
        %v795 = vmul.f32 %v750, 1.442695
        %v796 = vpow.pop %v795
        %v797 = vmul.f32 %v751, 1.442695
        %v798 = vpow.pop %v797
        %v799 = vmul.f32 %v752, 1.442695
        %v800 = vpow.pop %v799
        %v801 = vmul.f32 %v753, 1.442695
        %v802 = vpow.pop %v801
        %v803 = vmul.f32 %v754, 1.442695
        %v804 = vpow.pop %v803
        %v805 = vmul.f32 %v755, 1.442695
        %v806 = vpow.pop %v805
        %v807 = vmul.f32 %v756, 1.442695
        %v808 = vpow.pop %v807
        %v809 = vmul.f32 %v757, 1.442695
        %v810 = vpow.pop %v809
        %v811 = vmul.f32 %v758, 1.442695
        %v812 = vpow.pop %v811
        %v813 = vmul.f32 %v759, 1.442695
        %v814 = vpow.pop %v813
        %v815 = vmul.f32 %v760, 1.442695
        %v816 = vpow.pop %v815
        %v817 = vmul.f32 %v761, 1.442695
        %v818 = vpow.pop %v817
        %v819 = vmul.f32 %v762, 1.442695
        %v820 = vpow.pop %v819
        %v821 = vmul.f32 %v763, 1.442695
        %v822 = vpow.pop %v821
        %v823 = vmul.f32 %v764, 1.442695
        %v824 = vpow.pop %v823
        %v825 = vmul.f32 %v765, 1.442695
        %v826 = vpow.pop %v825
        %v827 = vmul.f32 %v766, 1.442695
        %v828 = vpow.pop %v827
        %v829 = vmul.f32 %v767, 1.442695
        %v830 = vpow.pop %v829
        %v831 = vmul.f32 %v768, 1.442695
        %v832 = vpow.pop %v831
        %v833 = vadd.f32 %v770, 1.0
        %v834 = vadd.f32 %v772, 1.0
        %v835 = vadd.f32 %v774, 1.0
        %v836 = vadd.f32 %v776, 1.0
        %v837 = vadd.f32 %v778, 1.0
        %v838 = vadd.f32 %v780, 1.0
        %v839 = vadd.f32 %v782, 1.0
        %v840 = vadd.f32 %v784, 1.0
        %v841 = vadd.f32 %v786, 1.0
        %v842 = vadd.f32 %v788, 1.0
        %v843 = vadd.f32 %v790, 1.0
        %v844 = vadd.f32 %v792, 1.0
        %v845 = vadd.f32 %v794, 1.0
        %v846 = vadd.f32 %v796, 1.0
        %v847 = vadd.f32 %v798, 1.0
        %v848 = vadd.f32 %v800, 1.0
        %v849 = vadd.f32 %v802, 1.0
        %v850 = vadd.f32 %v804, 1.0
        %v851 = vadd.f32 %v806, 1.0
        %v852 = vadd.f32 %v808, 1.0
        %v853 = vadd.f32 %v810, 1.0
        %v854 = vadd.f32 %v812, 1.0
        %v855 = vadd.f32 %v814, 1.0
        %v856 = vadd.f32 %v816, 1.0
        %v857 = vadd.f32 %v818, 1.0
        %v858 = vadd.f32 %v820, 1.0
        %v859 = vadd.f32 %v822, 1.0
        %v860 = vadd.f32 %v824, 1.0
        %v861 = vadd.f32 %v826, 1.0
        %v862 = vadd.f32 %v828, 1.0
        %v863 = vadd.f32 %v830, 1.0
        %v864 = vadd.f32 %v832, 1.0
        %v865 = vrcp.pop %v833
        %v866 = vmul.f32 1.0, %v865
        %v867 = vrcp.pop %v834
        %v868 = vmul.f32 1.0, %v867
        %v869 = vrcp.pop %v835
        %v870 = vmul.f32 1.0, %v869
        %v871 = vrcp.pop %v836
        %v872 = vmul.f32 1.0, %v871
        %v873 = vrcp.pop %v837
        %v874 = vmul.f32 1.0, %v873
        %v875 = vrcp.pop %v838
        %v876 = vmul.f32 1.0, %v875
        %v877 = vrcp.pop %v839
        %v878 = vmul.f32 1.0, %v877
        %v879 = vrcp.pop %v840
        %v880 = vmul.f32 1.0, %v879
        %v881 = vrcp.pop %v841
        %v882 = vmul.f32 1.0, %v881
        %v883 = vrcp.pop %v842
        %v884 = vmul.f32 1.0, %v883
        %v885 = vrcp.pop %v843
        %v886 = vmul.f32 1.0, %v885
        %v887 = vrcp.pop %v844
        %v888 = vmul.f32 1.0, %v887
        %v889 = vrcp.pop %v845
        %v890 = vmul.f32 1.0, %v889
        %v891 = vrcp.pop %v846
        %v892 = vmul.f32 1.0, %v891
        %v893 = vrcp.pop %v847
        %v894 = vmul.f32 1.0, %v893
        %v895 = vrcp.pop %v848
        %v896 = vmul.f32 1.0, %v895
        %v897 = vrcp.pop %v849
        %v898 = vmul.f32 1.0, %v897
        %v899 = vrcp.pop %v850
        %v900 = vmul.f32 1.0, %v899
        %v901 = vrcp.pop %v851
        %v902 = vmul.f32 1.0, %v901
        %v903 = vrcp.pop %v852
        %v904 = vmul.f32 1.0, %v903
        %v905 = vrcp.pop %v853
        %v906 = vmul.f32 1.0, %v905
        %v907 = vrcp.pop %v854
        %v908 = vmul.f32 1.0, %v907
        %v909 = vrcp.pop %v855
        %v910 = vmul.f32 1.0, %v909
        %v911 = vrcp.pop %v856
        %v912 = vmul.f32 1.0, %v911
        %v913 = vrcp.pop %v857
        %v914 = vmul.f32 1.0, %v913
        %v915 = vrcp.pop %v858
        %v916 = vmul.f32 1.0, %v915
        %v917 = vrcp.pop %v859
        %v918 = vmul.f32 1.0, %v917
        %v919 = vrcp.pop %v860
        %v920 = vmul.f32 1.0, %v919
        %v921 = vrcp.pop %v861
        %v922 = vmul.f32 1.0, %v921
        %v923 = vrcp.pop %v862
        %v924 = vmul.f32 1.0, %v923
        %v925 = vrcp.pop %v863
        %v926 = vmul.f32 1.0, %v925
        %v927 = vrcp.pop %v864
        %v928 = vmul.f32 1.0, %v927
        %929 = vst [vmem:[%s297] sm:$0xff] %v866
        %930 = vst [vmem:[%s297 + $0x8] sm:$0xff] %v868
        %931 = vst [vmem:[%s297 + $0x10] sm:$0xff] %v870
        %932 = vst [vmem:[%s297 + $0x18] sm:$0xff] %v872
        %933 = vst [vmem:[%s297 + $0x20] sm:$0xff] %v874
        %934 = vst [vmem:[%s297 + $0x28] sm:$0xff] %v876
        %935 = vst [vmem:[%s297 + $0x30] sm:$0xff] %v878
        %936 = vst [vmem:[%s297 + $0x38] sm:$0xff] %v880
        %937 = vst [vmem:[%s297 + $0x40] sm:$0xff] %v882
        %938 = vst [vmem:[%s297 + $0x48] sm:$0xff] %v884
        %939 = vst [vmem:[%s297 + $0x50] sm:$0xff] %v886
        %940 = vst [vmem:[%s297 + $0x58] sm:$0xff] %v888
        %941 = vst [vmem:[%s297 + $0x60] sm:$0xff] %v890
        %942 = vst [vmem:[%s297 + $0x68] sm:$0xff] %v892
        %943 = vst [vmem:[%s297 + $0x70] sm:$0xff] %v894
        %944 = vst [vmem:[%s297 + $0x78] sm:$0xff] %v896
        %945 = vst [vmem:[%s297 + $0x80] sm:$0xff] %v898
        %946 = vst [vmem:[%s297 + $0x88] sm:$0xff] %v900
        %947 = vst [vmem:[%s297 + $0x90] sm:$0xff] %v902
        %948 = vst [vmem:[%s297 + $0x98] sm:$0xff] %v904
        %949 = vst [vmem:[%s297 + $0xa0] sm:$0xff] %v906
        %950 = vst [vmem:[%s297 + $0xa8] sm:$0xff] %v908
        %951 = vst [vmem:[%s297 + $0xb0] sm:$0xff] %v910
        %952 = vst [vmem:[%s297 + $0xb8] sm:$0xff] %v912
        %953 = vst [vmem:[%s297 + $0xc0] sm:$0xff] %v914
        %954 = vst [vmem:[%s297 + $0xc8] sm:$0xff] %v916
        %955 = vst [vmem:[%s297 + $0xd0] sm:$0xff] %v918
        %956 = vst [vmem:[%s297 + $0xd8] sm:$0xff] %v920
        %957 = vst [vmem:[%s297 + $0xe0] sm:$0xff] %v922
        %958 = vst [vmem:[%s297 + $0xe8] sm:$0xff] %v924
        %959 = vst [vmem:[%s297 + $0xf0] sm:$0xff] %v926
        %960 = vst [vmem:[%s297 + $0xf8] sm:$0xff] %v928
        %s961 = sand.u32 %s142, 1
        %s962 = scalar_lea.sflag [#allocation4], %s961
        %s963 = sand.u32 %s142, 1
        %s964 = smul.addr %s963, 256
        %s965 = scalar_lea.vmem [#allocation11], %s964
        // Predicated region
        $region61: #{autoencoder_forward.1} parent=39 // pred_check
          %p966 = pneg %p152
        $region62: #{autoencoder_forward.1} parent=39 // pred_check_branch
          %968 = sbr.rel (%p966) target = $region64
        $region63: #{autoencoder_forward.1} parent=39 // pred_region
          %s969 = smul.u32 16, %s24
          %s971 = ssub.s32 4096, 4096
          %972 = vsyncadd %s962, %s971
          %s973 = smul.addr %s969, 2
          %s974 = smul.addr %s973, 128
          %s975 = scalar_lea.hbm %s5, %s974
          %s976 = sshll.u32 %s965, 4
          %s977 = int_to_ptr.vmem [resolvable:$true] %s976
          %982 = dma.vmem_to_hbm [thread:$0]  %s977, 4096, %s975, %s962, 256, 256, 16
        $region64: #{autoencoder_forward.1} parent=39 // pred_fallthru
          _
      $region40: #{autoencoder_forward.1} parent=5 // pred_fallthru
        _
      %p983 = scmp.le.s32.totalorder 2, %s19
      // Predicated region
      $region65: #{autoencoder_forward.1} parent=5 // pred_check
        %p984 = pneg %p983
      $region66: #{autoencoder_forward.1} parent=5 // pred_check_branch
        %986 = sbr.rel (%p984) target = $region68
      $region67: #{autoencoder_forward.1} parent=5 // pred_region
        %s987 = ssub.s32 %s19, 2
        // Predicated region
        $region69: #{autoencoder_forward.1} parent=67 // pred_check
          %p988 = pneg %p158
        $region70: #{autoencoder_forward.1} parent=67 // pred_check_branch
          %990 = sbr.rel (%p988) target = $region72
        $region71: #{autoencoder_forward.1} parent=67 // pred_region
          %s991 = sand.u32 %s143, 1
          %s992 = scalar_lea.sflag [#allocation4], %s991
          %s993 = sand.u32 %s143, 1
          %s994 = smul.addr %s993, 256
          %s995 = scalar_lea.vmem [#allocation11], %s994
          %996 = dma.done %s992, 4096
        $region72: #{autoencoder_forward.1} parent=67 // pred_fallthru
          _
      $region68: #{autoencoder_forward.1} parent=5 // pred_fallthru
        _
    $region6: #{autoencoder_forward.1} parent=1 // loop_footer
      %s23 = sadd.s32 1, %s19
    $region7: #{autoencoder_forward.1} parent=1 // loop_footer_branch
      %18 = sbr.rel target = $region3
    $region8: #{autoencoder_forward.1} parent=1 // loop_exit
      _
    %997 = vsyncpa [#allocation3], 1
    %s998 = scalar_lea.sflag [#allocation3], 1
    %999 = vsyncpa %s998, 1
    %1000 = vsyncpa [#allocation6], 1
    %1001 = vsyncpa [#allocation9], 1
    %1002 = vsyncpa [#allocation4], 1
    %s1003 = scalar_lea.sflag [#allocation4], 1
    %1004 = vsyncpa %s1003, 1

</llo_original>
